<compile_context>
chip_gen: v7x
topology: tpu7x:2x2x1
jax: 0.10.0
libtpu: 0.0.40
codegen_flags: <defaults>
</compile_context>

<pallas_src>
import functools

import jax
import jax.numpy as jnp
from jax.experimental import pallas as pl
from jax.experimental.pallas import tpu as pltpu

COEF = 0.97


def _preemphasis_kernel(x_ref, xb_ref, o_ref, *, coef):
    """One independent (block_b, block_t) tile.

    x_ref  : (block_b, block_t) main tile of x.
    xb_ref : (block_b, 128) slab of x holding the sample that precedes this
             tile's first lane:
               time-block k == 0 : 128-block 0              -> lane 1 (reflect)
               time-block k >= 1 : 128-block k*(block_t/128)-1 -> lane 127
                                   (= x[:, k*block_t - 1])
    """
    k = pl.program_id(1)
    x = x_ref[...]                                        # (block_b, block_t)
    c = jnp.asarray(coef, dtype=x.dtype)

    xb = xb_ref[...]                                      # (block_b, 128)
    carry = jnp.where(k == 0, xb[:, 1:2], xb[:, 127:128])  # (block_b, 1)

    # prev[:, j] = x[:, j-1] via the XLU; lane 0 replaced with the carried
    # boundary sample.  Single fused store (no masked partial store).
    prev = pltpu.roll(x, shift=1, axis=1)
    lane = jax.lax.broadcasted_iota(jnp.int32, x.shape, 1)
    prev = jnp.where(lane == 0, carry, prev)
    o_ref[...] = x - c * prev


def _vmem_capacity_bytes() -> int:
    try:
        return int(pltpu.get_tpu_info().vmem_capacity_bytes)
    except Exception:
        return 64 * 1024 * 1024          # conservative fallback (v7x per-TC)


def pre_emphasis(x, coef=COEF, *, block_t=None, block_b=None):
    B, T = x.shape
    assert T >= 2, "reflect padding needs at least 2 samples"
    dtype = x.dtype
    elem = jnp.dtype(dtype).itemsize

    t_full = pl.cdiv(T, 128) * 128                 # 128-lane-aligned extent

    # Batch tile: full batch when small, else sublane-aligned chunks.
    if block_b is None:
        block_b = B if B <= 8 else max(8, min((B // 8) * 8, 512))
    block_b = min(block_b, B)
    # TODO(synk): for tiny B (<8) fold time into the sublane axis
    # ((B*8, T/8) view + seam fix-up) to avoid ~8x sublane padding waste.

    # Generation-aware sizing: largest tile whose double-buffered in+out
    # working set stays well inside VMEM (~16 MiB payload target on
    # v5e/v6e's 128 MiB VMEM, ~8 MiB on v7x's 64 MiB).
    cap = _vmem_capacity_bytes()
    payload_target = max(1 << 20, cap // 8)
    # A (R, C) VMEM buffer occupies ceil(R*elem/32)*32 bytes per lane column
    # (native (8*packing, 128) tiling) -> size with the padded row bytes.
    padded_row_bytes = -(-(block_b * elem) // 32) * 32

    if block_t is None:
        bt = payload_target // padded_row_bytes
        block_t = max(128, (bt // 128) * 128)
    block_t = min(block_t, t_full)
    assert block_t % 128 == 0, "block_t must be a multiple of 128 lanes"

    tpb = block_t // 128                           # 128-lane blocks per tile

    blk_bytes = padded_row_bytes * block_t
    bdry_bytes = padded_row_bytes * 128
    vmem_limit = 2 * (2 * blk_bytes + bdry_bytes) + (2 << 20)
    vmem_limit = int(min(max(vmem_limit, 16 << 20), max(cap - (8 << 20), 32 << 20)))

    grid = (pl.cdiv(B, block_b), pl.cdiv(T, block_t))

    out = pl.pallas_call(
        functools.partial(_preemphasis_kernel, coef=coef),
        out_shape=jax.ShapeDtypeStruct((B, T), dtype),
        grid=grid,
        in_specs=[
            pl.BlockSpec((block_b, block_t), lambda i, k: (i, k)),
            # Tiny 128-lane slab carrying each tile's boundary sample; extra
            # HBM traffic is 128/block_t of the main stream (negligible) and
            # it removes every cross-iteration dependency.
            pl.BlockSpec((block_b, 128),
                         lambda i, k: (i, jnp.maximum(k * tpb - 1, 0))),
        ],
        out_specs=pl.BlockSpec((block_b, block_t), lambda i, k: (i, k)),
        compiler_params=pltpu.CompilerParams(
            dimension_semantics=("parallel", "parallel"),
            vmem_limit_bytes=vmem_limit,
        ),
    )(x, x)
    # TODO(synk): fuse this pass into the downstream framing/STFT consumer to
    # drop the extra HBM round trip (the op is purely HBM-bandwidth bound).
    return out


def pre_emphasis_ref(x, coef=COEF):
    # Pure-JAX reference of the PyTorch forward (reflect pad + conv1d).
    prev = jnp.concatenate([x[:, 1:2], x[:, :-1]], axis=1)
    return x - coef * prev


if __name__ == "__main__":
    key = jax.random.PRNGKey(0)
    k1, k2, k3 = jax.random.split(key, 3)

    # 1) Small waveform batch; single-tile path with default tiling.
    x1 = jax.random.normal(k1, (8, 512), dtype=jnp.float32)
    y1 = pre_emphasis(x1)
    jax.block_until_ready(y1)
    assert y1.shape == (8, 512)
    assert jnp.allclose(y1, pre_emphasis_ref(x1), atol=1e-6, rtol=1e-6)

    # 2) Forced time tiling + non-128-multiple T: exercises the boundary-slab
    #    path and the masked partial last tile (no wrapper pad/slice).
    x2 = jax.random.normal(k2, (4, 300), dtype=jnp.float32)
    y2 = pre_emphasis(x2, block_t=128)
    jax.block_until_ready(y2)
    assert y2.shape == (4, 300)
    assert jnp.allclose(y2, pre_emphasis_ref(x2), atol=1e-6, rtol=1e-6)

    # 3) Batch tiling with a partial batch block + time tiling together.
    x3 = jax.random.normal(k3, (10, 384), dtype=jnp.float32)
    y3 = pre_emphasis(x3, block_t=128)
    jax.block_until_ready(y3)
    assert y3.shape == (10, 384)
    assert jnp.allclose(y3, pre_emphasis_ref(x3), atol=1e-6, rtol=1e-6)

    print("KERNEL_OK")
</pallas_src>

<mosaic_0001>
module attributes {stable_mosaic.version = 11 : i64} {
  func.func @_preemphasis_kernel(%arg0: i32, %arg1: i32, %arg2: memref<8x512xf32, #tpu.memory_space<vmem>>, %arg3: memref<8x128xf32, #tpu.memory_space<vmem>>, %arg4: memref<8x512xf32, #tpu.memory_space<vmem>>) attributes {dimension_semantics = [#tpu.dimension_semantics<parallel>, #tpu.dimension_semantics<parallel>], iteration_bounds = array<i64: 1, 1>, scalar_prefetch = 0 : i64, scratch_operands = 0 : i64, tpu.core_type = #tpu.core_type<tc>, window_params = [{transform_indices = @transform_0, window_bounds = array<i64: 8, 512>}, {transform_indices = @transform_1, window_bounds = array<i64: 8, 128>}, {transform_indices = @transform_2, window_bounds = array<i64: 8, 512>}]} {
    %c0 = arith.constant 0 : index
    %c0_0 = arith.constant 0 : index
    %0 = vector.load %arg2[%c0, %c0_0] : memref<8x512xf32, #tpu.memory_space<vmem>>, vector<8x512xf32>
    %c0_1 = arith.constant 0 : index
    %c0_2 = arith.constant 0 : index
    %1 = vector.load %arg3[%c0_1, %c0_2] : memref<8x128xf32, #tpu.memory_space<vmem>>, vector<8x128xf32>
    %c0_i32 = arith.constant 0 : i32
    %2 = arith.cmpi eq, %arg1, %c0_i32 : i32
    %3 = vector.extract_strided_slice %1 {offsets = [0, 1], sizes = [8, 1], strides = [1, 1]} : vector<8x128xf32> to vector<8x1xf32>
    %4 = vector.extract_strided_slice %1 {offsets = [0, 127], sizes = [8, 1], strides = [1, 1]} : vector<8x128xf32> to vector<8x1xf32>
    %5 = arith.select %2, %3, %4 : vector<8x1xf32>
    %c1_i32 = arith.constant 1 : i32
    %6 = tpu.dynamic_rotate %0 by %c1_i32 dim 1 : vector<8x512xf32>, i32 -> vector<8x512xf32>
    %7 = tpu.iota {dimensions = array<i32: 1>} : vector<8x512xi32>
    %c0_i32_3 = arith.constant 0 : i32
    %8 = vector.broadcast %c0_i32_3 : i32 to vector<8x512xi32>
    %9 = arith.cmpi eq, %7, %8 : vector<8x512xi32>
    %10 = vector.shape_cast %5 : vector<8x1xf32> to vector<8x1xf32>
    %11 = vector.broadcast %10 : vector<8x1xf32> to vector<8x512xf32>
    %12 = arith.select %9, %11, %6 : vector<8x512xi1>, vector<8x512xf32>
    %cst = arith.constant 9.700000e-01 : f32
    %13 = vector.broadcast %cst : f32 to vector<8x512xf32>
    %14 = arith.mulf %13, %12 : vector<8x512xf32>
    %15 = arith.subf %0, %14 : vector<8x512xf32>
    %c0_4 = arith.constant 0 : index
    %c0_5 = arith.constant 0 : index
    %16 = vector.load %arg4[%c0_4, %c0_5] : memref<8x512xf32, #tpu.memory_space<vmem>>, vector<8x512xf32>
    tpu.vector_store %arg4[%c0_4, %c0_5], %15 {strides = array<i32>} : memref<8x512xf32, #tpu.memory_space<vmem>>, vector<8x512xf32>,
    return
  }
  func.func @transform_0(%arg0: i32, %arg1: i32) -> (i32, i32) {
    %c0_i32 = arith.constant 0 : i32
    return %arg0, %arg1 : i32, i32
  }
  func.func @transform_1(%arg0: i32, %arg1: i32) -> (i32, i32) {
    %c4_i32 = arith.constant 4 : i32
    %0 = arith.muli %arg1, %c4_i32 : i32
    %c1_i32 = arith.constant 1 : i32
    %1 = arith.subi %0, %c1_i32 : i32
    %c0_i32 = arith.constant 0 : i32
    %2 = arith.maxsi %1, %c0_i32 : i32
    %c0_i32_0 = arith.constant 0 : i32
    return %arg0, %2 : i32, i32
  }
  func.func @transform_2(%arg0: i32, %arg1: i32) -> (i32, i32) {
    %c0_i32 = arith.constant 0 : i32
    return %arg0, %arg1 : i32, i32
  }
}

</mosaic_0001>

<llo_original>
// kernel: tpu_custom_call.1
$region0: #{tpu_custom_call.1}
  #allocation0 [shape = 'u32[]', space=smem, size = 0x4, offset = 0x4, fixed_abs, tag = 'smem constant byte address 0x4 - core index']
  #allocation1 [shape = 'u32[144,128]{1,0:T(1,128)}', space=vmem, size = 0x12000, scoped, tag = 'internal scratch']
  %s0 = inlined_call_operand.hbm [shape: f32[8,512], index: 0, kind: input, shape index: {}]
  %s1 = inlined_call_operand.hbm [shape: f32[8,512], index: 1, kind: input, shape index: {}]
  %s2 = inlined_call_operand.hbm [shape: f32[8,512], index: 2, kind: output, shape index: {}]
  %s3 = sld [smem:[#allocation0]]
  $region26: #{tpu_custom_call.1} parent=0
    _
  %s5 = ssub.s32 1, %s3
  %s6 = scalar_select 0, %s5, %s3
  $region1: #{tpu_custom_call.1} parent=0
    #allocation2 [shape = 'u8[16384]{0}', space=vmem, size = 0x4000, scoped, tag = 'input window, operand 0, single buffered']
    #allocation3 [shape = 's32[1]{0}', space=sflag, size = 0x4, scoped, tag = 'scoped memory for tpu_custom_call.1']
    #allocation4 [shape = 's32[1]{0}', space=sflag, size = 0x4, scoped, tag = 'scoped memory for tpu_custom_call.1']
    #allocation5 [shape = 'u8[4096]{0}', space=vmem, size = 0x1000, scoped, tag = 'input window, operand 1, single buffered']
    #allocation6 [shape = 's32[1]{0}', space=sflag, size = 0x4, scoped, tag = 'scoped memory for tpu_custom_call.1']
    #allocation7 [shape = 'u8[16384]{0}', space=vmem, size = 0x4000, scoped, tag = 'output window, operand 0, single buffered']
    %7 = vsyncpa [#allocation3], 0
    %8 = vsyncpa [#allocation6], 0
    %9 = vsyncpa [#allocation4], 0
    // Predicated region
    $region2: #{tpu_custom_call.1} parent=1 // pred_check
      _
    $region3: #{tpu_custom_call.1} parent=1 // pred_check_branch
      %11 = sbr.rel (0) target = $region5
    $region4: #{tpu_custom_call.1} parent=1 // pred_region
      %s13 = ssub.s32 512, 512
      %14 = vsyncadd [#allocation3], %s13
      %s16 = sshll.u32 [#allocation2], 4
      %s17 = int_to_ptr.vmem [resolvable:$true] %s16
      %19 = dma.hbm_to_vmem [thread:$0]  %s0, 512, %s17, [#allocation3]
    $region5: #{tpu_custom_call.1} parent=1 // pred_fallthru
      _
    // Predicated region
    $region6: #{tpu_custom_call.1} parent=1 // pred_check
      _
    $region7: #{tpu_custom_call.1} parent=1 // pred_check_branch
      %21 = sbr.rel (0) target = $region9
    $region8: #{tpu_custom_call.1} parent=1 // pred_region
      %s22 = smul.u32 0, 4
      %s23 = ssub.s32 %s22, 1
      %p24 = scmp.gt.s32.totalorder %s23, 0
      %s25 = scalar_select %p24, %s23, 0
      %s27 = ssub.s32 128, 128
      %28 = vsyncadd [#allocation6], %s27
      %s29 = smul.addr %s25, 128
      %s30 = scalar_lea.hbm %s1, %s29
      %s32 = sshll.u32 [#allocation5], 4
      %s33 = int_to_ptr.vmem [resolvable:$true] %s32
      %35 = dma.hbm_to_vmem [thread:$0]  %s30, 128, %s33, [#allocation6]
    $region9: #{tpu_custom_call.1} parent=1 // pred_fallthru
      _
    // Predicated region
    $region10: #{tpu_custom_call.1} parent=1 // pred_check
      _
    $region11: #{tpu_custom_call.1} parent=1 // pred_check_branch
      %37 = sbr.rel (0) target = $region13
    $region12: #{tpu_custom_call.1} parent=1 // pred_region
      %38 = dma.done [#allocation3], 512
    $region13: #{tpu_custom_call.1} parent=1 // pred_fallthru
      _
    // Predicated region
    $region14: #{tpu_custom_call.1} parent=1 // pred_check
      _
    $region15: #{tpu_custom_call.1} parent=1 // pred_check_branch
      %40 = sbr.rel (0) target = $region17
    $region16: #{tpu_custom_call.1} parent=1 // pred_region
      %41 = dma.done [#allocation6], 128
    $region17: #{tpu_custom_call.1} parent=1 // pred_fallthru
      _
    %s42 = smul.u32 0, 4
    %s43 = ssub.s32 %s42, 1
    %p44 = scmp.gt.s32.totalorder %s43, 0
    %s45 = scalar_select %p44, %s43, 0
    %v46 = vld [vmem:[#allocation2] sm:$0xff]
    %v47 = vld [vmem:[#allocation2 + $0x8] sm:$0xff]
    %v48 = vld [vmem:[#allocation2 + $0x10] sm:$0xff]
    %v49 = vld [vmem:[#allocation2 + $0x18] sm:$0xff]
    %v50 = vld [vmem:[#allocation5] sm:$0xff]
    %p51 = scmp.eq.s32.totalorder 0, 0
    %s52 = scalar_select %p51, 1, 0
    %v53 = vstv %s52
    %vm54 = vcmp.eq.s32.totalorder %v53, 1
    %56 = vrot.lane.b32.xlu0 %v50, 2
    %v57 = vpop.permute.xlu0 %56
    %v59 = vsel %vm54, %v50, %v57
    %60 = vrot.lane.b32.xlu0 %v46, 1
    %v61 = vpop.permute.xlu0 %60
    %62 = vrot.lane.b32.xlu0 %v47, 1
    %v63 = vpop.permute.xlu0 %62
    %64 = vrot.lane.b32.xlu0 %v48, 1
    %v65 = vpop.permute.xlu0 %64
    %66 = vrot.lane.b32.xlu0 %v49, 1
    %v67 = vpop.permute.xlu0 %66
    %v68 = vlaneseq
    %v69 = vand.u32 %v68, 127
    %vm70 = vcmp.lt.s32.totalorder %v69, 1
    %v71 = vsel %vm70, %v65, %v67
    %v72 = vsel %vm70, %v63, %v65
    %v73 = vsel %vm70, %v61, %v63
    %v74 = vsel %vm70, %v67, %v61
    %v75 = vadd.s32 %v69, 128
    %v76 = vadd.s32 %v69, 256
    %v77 = vadd.s32 %v69, 384
    %vm78 = vcmp.eq.s32.totalorder %v69, 0
    %vm79 = vcmp.eq.s32.totalorder %v75, 0
    %vm80 = vcmp.eq.s32.totalorder %v76, 0
    %vm81 = vcmp.eq.s32.totalorder %v77, 0
    %83 = vset.pattern.permute.xlu0 1
    %84 = vperm.xlu0 %83, %v59
    %v85 = vpop.permute.xlu0 %84
    %v87 = vsel %vm78, %v85, %v74
    %v88 = vsel %vm79, %v85, %v73
    %v89 = vsel %vm80, %v85, %v72
    %v90 = vsel %vm81, %v85, %v71
    %v91 = vmul.f32 %v87, 0.97
    %v92 = vmul.f32 %v88, 0.97
    %v93 = vmul.f32 %v89, 0.97
    %v94 = vmul.f32 %v90, 0.97
    %v95 = vsub.f32 %v46, %v91
    %v96 = vsub.f32 %v47, %v92
    %v97 = vsub.f32 %v48, %v93
    %v98 = vsub.f32 %v49, %v94
    %99 = vst [vmem:[#allocation7] sm:$0xff] %v95
    %100 = vst [vmem:[#allocation7 + $0x8] sm:$0xff] %v96
    %101 = vst [vmem:[#allocation7 + $0x10] sm:$0xff] %v97
    %102 = vst [vmem:[#allocation7 + $0x18] sm:$0xff] %v98
    // Predicated region
    $region18: #{tpu_custom_call.1} parent=1 // pred_check
      _
    $region19: #{tpu_custom_call.1} parent=1 // pred_check_branch
      %104 = sbr.rel (0) target = $region21
    $region20: #{tpu_custom_call.1} parent=1 // pred_region
      %s106 = ssub.s32 512, 512
      %107 = vsyncadd [#allocation4], %s106
      %s109 = sshll.u32 [#allocation7], 4
      %s110 = int_to_ptr.vmem [resolvable:$true] %s109
      %112 = dma.vmem_to_hbm [thread:$0]  %s110, 512, %s2, [#allocation4]
    $region21: #{tpu_custom_call.1} parent=1 // pred_fallthru
      _
    // Predicated region
    $region22: #{tpu_custom_call.1} parent=1 // pred_check
      _
    $region23: #{tpu_custom_call.1} parent=1 // pred_check_branch
      %114 = sbr.rel (0) target = $region25
    $region24: #{tpu_custom_call.1} parent=1 // pred_region
      %115 = dma.done [#allocation4], 512
    $region25: #{tpu_custom_call.1} parent=1 // pred_fallthru
      _
    %116 = vsyncpa [#allocation3], 1
    %117 = vsyncpa [#allocation6], 1
    %118 = vsyncpa [#allocation4], 1

</llo_original>
